<compile_context>
chip_gen: v5e
topology: v5e:2x2
jax: 0.10.0
libtpu: 0.0.40
codegen_flags: <defaults>
</compile_context>

<pallas_src>
import math

import jax
import jax.numpy as jnp
from jax.experimental import pallas as pl
from jax.experimental.pallas import tpu as pltpu


def lstm_time_decoder_kernel(
    c_ref,       # (B, H)       context C
    t_ref,       # (T, B, 1)    timestamps
    wih_c_ref,   # (H, 4H)      LSTM input weights acting on C (pre-transposed)
    wih_t_ref,   # (H, 4H)      LSTM input weights acting on time_encoded
    whh_ref,     # (H, 4H)      LSTM recurrent weights (pre-transposed)
    b_ref,       # (1, 4H)      b_ih + b_hh
    wt_ref,      # (1, H)       time_lin weight^T
    bt_ref,      # (1, H)       time_lin bias
    wl_ref,      # (H, Dout)    lin weight^T
    bl_ref,      # (1, Dout)    lin bias
    out_ref,     # (T, B, Dout)
):
    T = out_ref.shape[0]
    B, H = c_ref.shape

    # ---- hoist all loop-invariant loads / matmuls out of the recurrence ----
    whh = whh_ref[...]                                   # (H, 4H)
    wl = wl_ref[...]                                     # (H, Dout)
    bl = bl_ref[...]                                     # (1, Dout)

    # time_lin composes linearly with the LSTM input projection:
    #   (dt * w_t + b_t) @ Wih_t == dt * (w_t @ Wih_t) + (b_t @ Wih_t)
    wt_g = jnp.dot(wt_ref[...], wih_t_ref[...],
                   preferred_element_type=jnp.float32)   # (1, 4H)
    bt_g = jnp.dot(bt_ref[...], wih_t_ref[...],
                   preferred_element_type=jnp.float32)   # (1, 4H)

    # Step-invariant gate pre-activation: C @ Wih_C + (b_ih + b_hh) + b_t @ Wih_t
    const_g = (
        jnp.dot(c_ref[...], wih_c_ref[...], preferred_element_type=jnp.float32)
        + b_ref[...]
        + bt_g
    )                                                    # (B, 4H)

    h = jnp.zeros((B, H), jnp.float32)
    c = jnp.zeros((B, H), jnp.float32)

    # ---- fully-unrolled static time loop (T is small & static) -------------
    # h/c stay in vregs; the off-chain work (dt, output projection, stores)
    # overlaps with the serial recurrence.
    for s in range(T):
        if s == 0:
            pre = const_g                                # t_delta_mat[0] == 0
        else:
            dt = t_ref[s] - t_ref[s - 1]                 # (B, 1)
            pre = const_g + dt * wt_g                    # (B, 4H)

        # Only the recurrent matmul sits on the critical path.
        gates = pre + jnp.dot(h, whh, preferred_element_type=jnp.float32)  # (B, 4H)

        # Two whole-vreg EUP calls, then static lane slices (gate order i,f,g,o).
        sig = jax.nn.sigmoid(gates)
        th = jnp.tanh(gates)
        i_g = sig[:, 0 * H:1 * H]
        f_g = sig[:, 1 * H:2 * H]
        g_g = th[:, 2 * H:3 * H]
        o_g = sig[:, 3 * H:4 * H]

        c = f_g * c + i_g * g_g
        h = o_g * jnp.tanh(c)

        # Output projection — independent of the next step, overlaps freely.
        out_ref[s] = jnp.dot(h, wl, preferred_element_type=jnp.float32) + bl


def lstm_time_decoder_pallas(C, t, mask, w_ih, w_hh, b_ih, b_hh,
                             w_time, b_time, w_lin, b_lin, max_seq_len):
    """LSTMTimeDecoder forward.

    C: (B, H), t: (T, B, 1) with T >= max_seq_len, mask: unused by forward.
    w_ih: (4H, 2H), w_hh: (4H, H), b_ih/b_hh: (4H,)   -- PyTorch nn.LSTM layout.
    w_time: (H, 1), b_time: (H,)                       -- nn.Linear(1, H).
    w_lin: (Dout, H), b_lin: (Dout,)                   -- nn.Linear(H, Dout).
    Returns (max_seq_len, B, Dout) float32.
    """
    del mask  # TODO(synk): `mask` is accepted for API parity but unused by the module's forward.
    B, H = C.shape
    Dout = w_lin.shape[0]
    T = max_seq_len

    wih_T = w_ih.T                      # (2H, 4H), gate columns in (i, f, g, o) order
    wih_c = wih_T[0:H, :]               # acts on C (first half of lstm_in)
    wih_t = wih_T[H:2 * H, :]           # acts on time_encoded (second half)
    whh = w_hh.T                        # (H, 4H)
    b = (b_ih + b_hh).reshape(1, 4 * H)
    wt = w_time.T                       # (1, H)
    bt = b_time.reshape(1, H)
    wl = w_lin.T                        # (H, Dout)
    bl = b_lin.reshape(1, Dout)

    vmem = pl.BlockSpec(memory_space=pltpu.MemorySpace.VMEM)
    return pl.pallas_call(
        lstm_time_decoder_kernel,
        out_shape=jax.ShapeDtypeStruct((T, B, Dout), jnp.float32),
        in_specs=[vmem] * 10,
        out_specs=vmem,
    )(C, t[:T], wih_c, wih_t, whh, b, wt, bt, wl, bl)


# ----------------------------- pure-JAX reference ----------------------------
def lstm_time_decoder_ref(C, t, mask, w_ih, w_hh, b_ih, b_hh,
                          w_time, b_time, w_lin, b_lin, max_seq_len):
    del mask
    B, H = C.shape
    t_delta = t[1:] - t[:-1]
    t_delta_mat = jnp.concatenate([jnp.zeros_like(t_delta[0:1]), t_delta], axis=0)
    time_encoded = t_delta_mat[:, :, 0:1] @ w_time.T + b_time      # (T, B, H)

    def cell(h, c, x):
        gates = x @ w_ih.T + h @ w_hh.T + b_ih + b_hh
        i = jax.nn.sigmoid(gates[:, 0:H])
        f = jax.nn.sigmoid(gates[:, H:2 * H])
        g = jnp.tanh(gates[:, 2 * H:3 * H])
        o = jax.nn.sigmoid(gates[:, 3 * H:4 * H])
        c = f * c + i * g
        h = o * jnp.tanh(c)
        return h, c

    h = jnp.zeros((B, H), jnp.float32)
    c = jnp.zeros((B, H), jnp.float32)
    outs = []
    for s in range(max_seq_len):
        x = jnp.concatenate([C, time_encoded[s]], axis=-1)          # (B, 2H)
        h, c = cell(h, c, x)
        outs.append(h @ w_lin.T + b_lin)                            # (B, Dout)
    return jnp.stack(outs, axis=0)                                  # (T, B, Dout)


if __name__ == "__main__":
    # Small shapes consistent with the module: max_seq_len=8, batch=2,
    # hidden_dim=32 (LSTM input = 2*hidden_dim = 64), output_dim=4.
    T, B, H, DOUT = 8, 2, 32, 4
    H2, H4 = 2 * H, 4 * H

    key = jax.random.PRNGKey(0)
    keys = jax.random.split(key, 10)
    scale = 1.0 / math.sqrt(H)          # PyTorch LSTM/Linear uniform(-1/sqrt(H), 1/sqrt(H))

    def unif(k, shape, s=scale):
        return jax.random.uniform(k, shape, jnp.float32, -s, s)

    C = jax.random.normal(keys[0], (B, H), dtype=jnp.float32)
    # Monotone timestamps, shape (T, B, 1) as the module expects.
    t = jnp.cumsum(jax.random.uniform(keys[1], (T, B, 1), jnp.float32, 0.1, 1.0), axis=0)
    mask = jnp.ones((T, B, DOUT), dtype=jnp.float32)   # unused by forward

    # nn.LSTM(2H, H) parameters (PyTorch layout, gate order i, f, g, o)
    w_ih = unif(keys[2], (H4, H2))
    w_hh = unif(keys[3], (H4, H))
    b_ih = unif(keys[4], (H4,))
    b_hh = unif(keys[5], (H4,))
    # nn.Linear(1, H)
    w_time = unif(keys[6], (H, 1), 1.0)
    b_time = unif(keys[7], (H,), 1.0)
    # nn.Linear(H, DOUT)
    w_lin = unif(keys[8], (DOUT, H))
    b_lin = unif(keys[9], (DOUT,))

    out = lstm_time_decoder_pallas(C, t, mask, w_ih, w_hh, b_ih, b_hh,
                                   w_time, b_time, w_lin, b_lin, T)
    out = jax.block_until_ready(out)

    ref = lstm_time_decoder_ref(C, t, mask, w_ih, w_hh, b_ih, b_hh,
                                w_time, b_time, w_lin, b_lin, T)
    assert out.shape == (T, B, DOUT)
    max_err = jnp.max(jnp.abs(out - ref))
    assert jnp.allclose(out, ref, atol=1e-4, rtol=1e-4), f"max abs err {max_err}"

    print("KERNEL_OK")
</pallas_src>

<mosaic_0001>
module attributes {stable_mosaic.version = 11 : i64} {
  func.func @lstm_time_decoder_kernel(%arg0: memref<2x32xf32, #tpu.memory_space<vmem>>, %arg1: memref<8x2x1xf32, #tpu.memory_space<vmem>>, %arg2: memref<32x128xf32, #tpu.memory_space<vmem>>, %arg3: memref<32x128xf32, #tpu.memory_space<vmem>>, %arg4: memref<32x128xf32, #tpu.memory_space<vmem>>, %arg5: memref<1x128xf32, #tpu.memory_space<vmem>>, %arg6: memref<1x32xf32, #tpu.memory_space<vmem>>, %arg7: memref<1x32xf32, #tpu.memory_space<vmem>>, %arg8: memref<32x4xf32, #tpu.memory_space<vmem>>, %arg9: memref<1x4xf32, #tpu.memory_space<vmem>>, %arg10: memref<8x2x4xf32, #tpu.memory_space<vmem>>) attributes {dimension_semantics = [], scalar_prefetch = 0 : i64, scratch_operands = 0 : i64, tpu.core_type = #tpu.core_type<tc>} {
    %c0 = arith.constant 0 : index
    %c0_0 = arith.constant 0 : index
    %0 = vector.load %arg4[%c0, %c0_0] : memref<32x128xf32, #tpu.memory_space<vmem>>, vector<32x128xf32>
    %c0_1 = arith.constant 0 : index
    %c0_2 = arith.constant 0 : index
    %1 = vector.load %arg8[%c0_1, %c0_2] : memref<32x4xf32, #tpu.memory_space<vmem>>, vector<32x4xf32>
    %c0_3 = arith.constant 0 : index
    %c0_4 = arith.constant 0 : index
    %2 = vector.load %arg9[%c0_3, %c0_4] : memref<1x4xf32, #tpu.memory_space<vmem>>, vector<1x4xf32>
    %c0_5 = arith.constant 0 : index
    %c0_6 = arith.constant 0 : index
    %3 = vector.load %arg6[%c0_5, %c0_6] : memref<1x32xf32, #tpu.memory_space<vmem>>, vector<1x32xf32>
    %c0_7 = arith.constant 0 : index
    %c0_8 = arith.constant 0 : index
    %4 = vector.load %arg3[%c0_7, %c0_8] : memref<32x128xf32, #tpu.memory_space<vmem>>, vector<32x128xf32>
    %cst = arith.constant dense<0.000000e+00> : vector<1x128xf32>
    %5 = tpu.matmul %3, %4, %cst {dimension_numbers = #tpu.dot_dimension_numbers<[1], [0], [0], [1], [0, 0, 1, 1], [], []>} : vector<1x32xf32>, vector<32x128xf32>, vector<1x128xf32> -> vector<1x128xf32>
    %c0_9 = arith.constant 0 : index
    %c0_10 = arith.constant 0 : index
    %6 = vector.load %arg7[%c0_9, %c0_10] : memref<1x32xf32, #tpu.memory_space<vmem>>, vector<1x32xf32>
    %c0_11 = arith.constant 0 : index
    %c0_12 = arith.constant 0 : index
    %7 = vector.load %arg3[%c0_11, %c0_12] : memref<32x128xf32, #tpu.memory_space<vmem>>, vector<32x128xf32>
    %cst_13 = arith.constant dense<0.000000e+00> : vector<1x128xf32>
    %8 = tpu.matmul %6, %7, %cst_13 {dimension_numbers = #tpu.dot_dimension_numbers<[1], [0], [0], [1], [0, 0, 1, 1], [], []>} : vector<1x32xf32>, vector<32x128xf32>, vector<1x128xf32> -> vector<1x128xf32>
    %c0_14 = arith.constant 0 : index
    %c0_15 = arith.constant 0 : index
    %9 = vector.load %arg0[%c0_14, %c0_15] : memref<2x32xf32, #tpu.memory_space<vmem>>, vector<2x32xf32>
    %c0_16 = arith.constant 0 : index
    %c0_17 = arith.constant 0 : index
    %10 = vector.load %arg2[%c0_16, %c0_17] : memref<32x128xf32, #tpu.memory_space<vmem>>, vector<32x128xf32>
    %cst_18 = arith.constant dense<0.000000e+00> : vector<2x128xf32>
    %11 = tpu.matmul %9, %10, %cst_18 {dimension_numbers = #tpu.dot_dimension_numbers<[1], [0], [0], [1], [0, 0, 1, 1], [], []>} : vector<2x32xf32>, vector<32x128xf32>, vector<2x128xf32> -> vector<2x128xf32>
    %c0_19 = arith.constant 0 : index
    %c0_20 = arith.constant 0 : index
    %12 = vector.load %arg5[%c0_19, %c0_20] : memref<1x128xf32, #tpu.memory_space<vmem>>, vector<1x128xf32>
    %13 = vector.broadcast %12 : vector<1x128xf32> to vector<2x128xf32>
    %14 = arith.addf %11, %13 : vector<2x128xf32>
    %15 = vector.broadcast %8 : vector<1x128xf32> to vector<2x128xf32>
    %16 = arith.addf %14, %15 : vector<2x128xf32>
    %cst_21 = arith.constant 0.000000e+00 : f32
    %17 = vector.broadcast %cst_21 : f32 to vector<2x32xf32>
    %cst_22 = arith.constant 0.000000e+00 : f32
    %18 = vector.broadcast %cst_22 : f32 to vector<2x32xf32>
    %cst_23 = arith.constant dense<0.000000e+00> : vector<2x128xf32>
    %19 = tpu.matmul %17, %0, %cst_23 {dimension_numbers = #tpu.dot_dimension_numbers<[1], [0], [0], [1], [0, 0, 1, 1], [], []>} : vector<2x32xf32>, vector<32x128xf32>, vector<2x128xf32> -> vector<2x128xf32>
    %20 = arith.addf %16, %19 : vector<2x128xf32>
    %21 = arith.negf %20 : vector<2x128xf32>
    %22 = math.exp %21 : vector<2x128xf32>
    %cst_24 = arith.constant 1.000000e+00 : f32
    %23 = vector.broadcast %cst_24 : f32 to vector<2x128xf32>
    %24 = arith.addf %23, %22 : vector<2x128xf32>
    %25 = arith.divf %23, %24 : vector<2x128xf32>
    %26 = math.tanh %20 : vector<2x128xf32>
    %27 = vector.extract_strided_slice %25 {offsets = [0, 0], sizes = [2, 32], strides = [1, 1]} : vector<2x128xf32> to vector<2x32xf32>
    %28 = vector.extract_strided_slice %25 {offsets = [0, 32], sizes = [2, 32], strides = [1, 1]} : vector<2x128xf32> to vector<2x32xf32>
    %29 = vector.extract_strided_slice %26 {offsets = [0, 64], sizes = [2, 32], strides = [1, 1]} : vector<2x128xf32> to vector<2x32xf32>
    %30 = vector.extract_strided_slice %25 {offsets = [0, 96], sizes = [2, 32], strides = [1, 1]} : vector<2x128xf32> to vector<2x32xf32>
    %31 = arith.mulf %28, %18 : vector<2x32xf32>
    %32 = arith.mulf %27, %29 : vector<2x32xf32>
    %33 = arith.addf %31, %32 : vector<2x32xf32>
    %34 = math.tanh %33 : vector<2x32xf32>
    %35 = arith.mulf %30, %34 : vector<2x32xf32>
    %cst_25 = arith.constant dense<0.000000e+00> : vector<2x4xf32>
    %36 = tpu.matmul %35, %1, %cst_25 {dimension_numbers = #tpu.dot_dimension_numbers<[1], [0], [0], [1], [0, 0, 1, 1], [], []>} : vector<2x32xf32>, vector<32x4xf32>, vector<2x4xf32> -> vector<2x4xf32>
    %37 = vector.broadcast %2 : vector<1x4xf32> to vector<2x4xf32>
    %38 = arith.addf %36, %37 : vector<2x4xf32>
    %c0_26 = arith.constant 0 : index
    %c0_27 = arith.constant 0 : index
    %c0_28 = arith.constant 0 : index
    %39 = vector.load %arg10[%c0_26, %c0_27, %c0_28] : memref<8x2x4xf32, #tpu.memory_space<vmem>>, vector<1x2x4xf32>
    %40 = vector.shape_cast %39 : vector<1x2x4xf32> to vector<2x4xf32>
    %41 = vector.shape_cast %38 : vector<2x4xf32> to vector<1x2x4xf32>
    tpu.vector_store %arg10[%c0_26, %c0_27, %c0_28], %41 {strides = array<i32>} : memref<8x2x4xf32, #tpu.memory_space<vmem>>, vector<1x2x4xf32>,
    %c1 = arith.constant 1 : index
    %c0_29 = arith.constant 0 : index
    %c0_30 = arith.constant 0 : index
    %42 = vector.load %arg1[%c1, %c0_29, %c0_30] : memref<8x2x1xf32, #tpu.memory_space<vmem>>, vector<1x2x1xf32>
    %43 = vector.shape_cast %42 : vector<1x2x1xf32> to vector<2x1xf32>
    %c0_31 = arith.constant 0 : index
    %c0_32 = arith.constant 0 : index
    %c0_33 = arith.constant 0 : index
    %44 = vector.load %arg1[%c0_31, %c0_32, %c0_33] : memref<8x2x1xf32, #tpu.memory_space<vmem>>, vector<1x2x1xf32>
    %45 = vector.shape_cast %44 : vector<1x2x1xf32> to vector<2x1xf32>
    %46 = arith.subf %43, %45 : vector<2x1xf32>
    %47 = vector.broadcast %46 : vector<2x1xf32> to vector<2x128xf32>
    %48 = vector.broadcast %5 : vector<1x128xf32> to vector<2x128xf32>
    %49 = arith.mulf %47, %48 : vector<2x128xf32>
    %50 = arith.addf %16, %49 : vector<2x128xf32>
    %cst_34 = arith.constant dense<0.000000e+00> : vector<2x128xf32>
    %51 = tpu.matmul %35, %0, %cst_34 {dimension_numbers = #tpu.dot_dimension_numbers<[1], [0], [0], [1], [0, 0, 1, 1], [], []>} : vector<2x32xf32>, vector<32x128xf32>, vector<2x128xf32> -> vector<2x128xf32>
    %52 = arith.addf %50, %51 : vector<2x128xf32>
    %53 = arith.negf %52 : vector<2x128xf32>
    %54 = math.exp %53 : vector<2x128xf32>
    %cst_35 = arith.constant 1.000000e+00 : f32
    %55 = vector.broadcast %cst_35 : f32 to vector<2x128xf32>
    %56 = arith.addf %55, %54 : vector<2x128xf32>
    %57 = arith.divf %55, %56 : vector<2x128xf32>
    %58 = math.tanh %52 : vector<2x128xf32>
    %59 = vector.extract_strided_slice %57 {offsets = [0, 0], sizes = [2, 32], strides = [1, 1]} : vector<2x128xf32> to vector<2x32xf32>
    %60 = vector.extract_strided_slice %57 {offsets = [0, 32], sizes = [2, 32], strides = [1, 1]} : vector<2x128xf32> to vector<2x32xf32>
    %61 = vector.extract_strided_slice %58 {offsets = [0, 64], sizes = [2, 32], strides = [1, 1]} : vector<2x128xf32> to vector<2x32xf32>
    %62 = vector.extract_strided_slice %57 {offsets = [0, 96], sizes = [2, 32], strides = [1, 1]} : vector<2x128xf32> to vector<2x32xf32>
    %63 = arith.mulf %60, %33 : vector<2x32xf32>
    %64 = arith.mulf %59, %61 : vector<2x32xf32>
    %65 = arith.addf %63, %64 : vector<2x32xf32>
    %66 = math.tanh %65 : vector<2x32xf32>
    %67 = arith.mulf %62, %66 : vector<2x32xf32>
    %cst_36 = arith.constant dense<0.000000e+00> : vector<2x4xf32>
    %68 = tpu.matmul %67, %1, %cst_36 {dimension_numbers = #tpu.dot_dimension_numbers<[1], [0], [0], [1], [0, 0, 1, 1], [], []>} : vector<2x32xf32>, vector<32x4xf32>, vector<2x4xf32> -> vector<2x4xf32>
    %69 = vector.broadcast %2 : vector<1x4xf32> to vector<2x4xf32>
    %70 = arith.addf %68, %69 : vector<2x4xf32>
    %c1_37 = arith.constant 1 : index
    %c0_38 = arith.constant 0 : index
    %c0_39 = arith.constant 0 : index
    %71 = vector.load %arg10[%c1_37, %c0_38, %c0_39] : memref<8x2x4xf32, #tpu.memory_space<vmem>>, vector<1x2x4xf32>
    %72 = vector.shape_cast %71 : vector<1x2x4xf32> to vector<2x4xf32>
    %73 = vector.shape_cast %70 : vector<2x4xf32> to vector<1x2x4xf32>
    tpu.vector_store %arg10[%c1_37, %c0_38, %c0_39], %73 {strides = array<i32>} : memref<8x2x4xf32, #tpu.memory_space<vmem>>, vector<1x2x4xf32>,
    %c2 = arith.constant 2 : index
    %c0_40 = arith.constant 0 : index
    %c0_41 = arith.constant 0 : index
    %74 = vector.load %arg1[%c2, %c0_40, %c0_41] : memref<8x2x1xf32, #tpu.memory_space<vmem>>, vector<1x2x1xf32>
    %75 = vector.shape_cast %74 : vector<1x2x1xf32> to vector<2x1xf32>
    %c1_42 = arith.constant 1 : index
    %c0_43 = arith.constant 0 : index
    %c0_44 = arith.constant 0 : index
    %76 = vector.load %arg1[%c1_42, %c0_43, %c0_44] : memref<8x2x1xf32, #tpu.memory_space<vmem>>, vector<1x2x1xf32>
    %77 = vector.shape_cast %76 : vector<1x2x1xf32> to vector<2x1xf32>
    %78 = arith.subf %75, %77 : vector<2x1xf32>
    %79 = vector.broadcast %78 : vector<2x1xf32> to vector<2x128xf32>
    %80 = vector.broadcast %5 : vector<1x128xf32> to vector<2x128xf32>
    %81 = arith.mulf %79, %80 : vector<2x128xf32>
    %82 = arith.addf %16, %81 : vector<2x128xf32>
    %cst_45 = arith.constant dense<0.000000e+00> : vector<2x128xf32>
    %83 = tpu.matmul %67, %0, %cst_45 {dimension_numbers = #tpu.dot_dimension_numbers<[1], [0], [0], [1], [0, 0, 1, 1], [], []>} : vector<2x32xf32>, vector<32x128xf32>, vector<2x128xf32> -> vector<2x128xf32>
    %84 = arith.addf %82, %83 : vector<2x128xf32>
    %85 = arith.negf %84 : vector<2x128xf32>
    %86 = math.exp %85 : vector<2x128xf32>
    %cst_46 = arith.constant 1.000000e+00 : f32
    %87 = vector.broadcast %cst_46 : f32 to vector<2x128xf32>
    %88 = arith.addf %87, %86 : vector<2x128xf32>
    %89 = arith.divf %87, %88 : vector<2x128xf32>
    %90 = math.tanh %84 : vector<2x128xf32>
    %91 = vector.extract_strided_slice %89 {offsets = [0, 0], sizes = [2, 32], strides = [1, 1]} : vector<2x128xf32> to vector<2x32xf32>
    %92 = vector.extract_strided_slice %89 {offsets = [0, 32], sizes = [2, 32], strides = [1, 1]} : vector<2x128xf32> to vector<2x32xf32>
    %93 = vector.extract_strided_slice %90 {offsets = [0, 64], sizes = [2, 32], strides = [1, 1]} : vector<2x128xf32> to vector<2x32xf32>
    %94 = vector.extract_strided_slice %89 {offsets = [0, 96], sizes = [2, 32], strides = [1, 1]} : vector<2x128xf32> to vector<2x32xf32>
    %95 = arith.mulf %92, %65 : vector<2x32xf32>
    %96 = arith.mulf %91, %93 : vector<2x32xf32>
    %97 = arith.addf %95, %96 : vector<2x32xf32>
    %98 = math.tanh %97 : vector<2x32xf32>
    %99 = arith.mulf %94, %98 : vector<2x32xf32>
    %cst_47 = arith.constant dense<0.000000e+00> : vector<2x4xf32>
    %100 = tpu.matmul %99, %1, %cst_47 {dimension_numbers = #tpu.dot_dimension_numbers<[1], [0], [0], [1], [0, 0, 1, 1], [], []>} : vector<2x32xf32>, vector<32x4xf32>, vector<2x4xf32> -> vector<2x4xf32>
    %101 = vector.broadcast %2 : vector<1x4xf32> to vector<2x4xf32>
    %102 = arith.addf %100, %101 : vector<2x4xf32>
    %c2_48 = arith.constant 2 : index
    %c0_49 = arith.constant 0 : index
    %c0_50 = arith.constant 0 : index
    %103 = vector.load %arg10[%c2_48, %c0_49, %c0_50] : memref<8x2x4xf32, #tpu.memory_space<vmem>>, vector<1x2x4xf32>
    %104 = vector.shape_cast %103 : vector<1x2x4xf32> to vector<2x4xf32>
    %105 = vector.shape_cast %102 : vector<2x4xf32> to vector<1x2x4xf32>
    tpu.vector_store %arg10[%c2_48, %c0_49, %c0_50], %105 {strides = array<i32>} : memref<8x2x4xf32, #tpu.memory_space<vmem>>, vector<1x2x4xf32>,
    %c3 = arith.constant 3 : index
    %c0_51 = arith.constant 0 : index
    %c0_52 = arith.constant 0 : index
    %106 = vector.load %arg1[%c3, %c0_51, %c0_52] : memref<8x2x1xf32, #tpu.memory_space<vmem>>, vector<1x2x1xf32>
    %107 = vector.shape_cast %106 : vector<1x2x1xf32> to vector<2x1xf32>
    %c2_53 = arith.constant 2 : index
    %c0_54 = arith.constant 0 : index
    %c0_55 = arith.constant 0 : index
    %108 = vector.load %arg1[%c2_53, %c0_54, %c0_55] : memref<8x2x1xf32, #tpu.memory_space<vmem>>, vector<1x2x1xf32>
    %109 = vector.shape_cast %108 : vector<1x2x1xf32> to vector<2x1xf32>
    %110 = arith.subf %107, %109 : vector<2x1xf32>
    %111 = vector.broadcast %110 : vector<2x1xf32> to vector<2x128xf32>
    %112 = vector.broadcast %5 : vector<1x128xf32> to vector<2x128xf32>
    %113 = arith.mulf %111, %112 : vector<2x128xf32>
    %114 = arith.addf %16, %113 : vector<2x128xf32>
    %cst_56 = arith.constant dense<0.000000e+00> : vector<2x128xf32>
    %115 = tpu.matmul %99, %0, %cst_56 {dimension_numbers = #tpu.dot_dimension_numbers<[1], [0], [0], [1], [0, 0, 1, 1], [], []>} : vector<2x32xf32>, vector<32x128xf32>, vector<2x128xf32> -> vector<2x128xf32>
    %116 = arith.addf %114, %115 : vector<2x128xf32>
    %117 = arith.negf %116 : vector<2x128xf32>
    %118 = math.exp %117 : vector<2x128xf32>
    %cst_57 = arith.constant 1.000000e+00 : f32
    %119 = vector.broadcast %cst_57 : f32 to vector<2x128xf32>
    %120 = arith.addf %119, %118 : vector<2x128xf32>
    %121 = arith.divf %119, %120 : vector<2x128xf32>
    %122 = math.tanh %116 : vector<2x128xf32>
    %123 = vector.extract_strided_slice %121 {offsets = [0, 0], sizes = [2, 32], strides = [1, 1]} : vector<2x128xf32> to vector<2x32xf32>
    %124 = vector.extract_strided_slice %121 {offsets = [0, 32], sizes = [2, 32], strides = [1, 1]} : vector<2x128xf32> to vector<2x32xf32>
    %125 = vector.extract_strided_slice %122 {offsets = [0, 64], sizes = [2, 32], strides = [1, 1]} : vector<2x128xf32> to vector<2x32xf32>
    %126 = vector.extract_strided_slice %121 {offsets = [0, 96], sizes = [2, 32], strides = [1, 1]} : vector<2x128xf32> to vector<2x32xf32>
    %127 = arith.mulf %124, %97 : vector<2x32xf32>
    %128 = arith.mulf %123, %125 : vector<2x32xf32>
    %129 = arith.addf %127, %128 : vector<2x32xf32>
    %130 = math.tanh %129 : vector<2x32xf32>
    %131 = arith.mulf %126, %130 : vector<2x32xf32>
    %cst_58 = arith.constant dense<0.000000e+00> : vector<2x4xf32>
    %132 = tpu.matmul %131, %1, %cst_58 {dimension_numbers = #tpu.dot_dimension_numbers<[1], [0], [0], [1], [0, 0, 1, 1], [], []>} : vector<2x32xf32>, vector<32x4xf32>, vector<2x4xf32> -> vector<2x4xf32>
    %133 = vector.broadcast %2 : vector<1x4xf32> to vector<2x4xf32>
    %134 = arith.addf %132, %133 : vector<2x4xf32>
    %c3_59 = arith.constant 3 : index
    %c0_60 = arith.constant 0 : index
    %c0_61 = arith.constant 0 : index
    %135 = vector.load %arg10[%c3_59, %c0_60, %c0_61] : memref<8x2x4xf32, #tpu.memory_space<vmem>>, vector<1x2x4xf32>
    %136 = vector.shape_cast %135 : vector<1x2x4xf32> to vector<2x4xf32>
    %137 = vector.shape_cast %134 : vector<2x4xf32> to vector<1x2x4xf32>
    tpu.vector_store %arg10[%c3_59, %c0_60, %c0_61], %137 {strides = array<i32>} : memref<8x2x4xf32, #tpu.memory_space<vmem>>, vector<1x2x4xf32>,
    %c4 = arith.constant 4 : index
    %c0_62 = arith.constant 0 : index
    %c0_63 = arith.constant 0 : index
    %138 = vector.load %arg1[%c4, %c0_62, %c0_63] : memref<8x2x1xf32, #tpu.memory_space<vmem>>, vector<1x2x1xf32>
    %139 = vector.shape_cast %138 : vector<1x2x1xf32> to vector<2x1xf32>
    %c3_64 = arith.constant 3 : index
    %c0_65 = arith.constant 0 : index
    %c0_66 = arith.constant 0 : index
    %140 = vector.load %arg1[%c3_64, %c0_65, %c0_66] : memref<8x2x1xf32, #tpu.memory_space<vmem>>, vector<1x2x1xf32>
    %141 = vector.shape_cast %140 : vector<1x2x1xf32> to vector<2x1xf32>
    %142 = arith.subf %139, %141 : vector<2x1xf32>
    %143 = vector.broadcast %142 : vector<2x1xf32> to vector<2x128xf32>
    %144 = vector.broadcast %5 : vector<1x128xf32> to vector<2x128xf32>
    %145 = arith.mulf %143, %144 : vector<2x128xf32>
    %146 = arith.addf %16, %145 : vector<2x128xf32>
    %cst_67 = arith.constant dense<0.000000e+00> : vector<2x128xf32>
    %147 = tpu.matmul %131, %0, %cst_67 {dimension_numbers = #tpu.dot_dimension_numbers<[1], [0], [0], [1], [0, 0, 1, 1], [], []>} : vector<2x32xf32>, vector<32x128xf32>, vector<2x128xf32> -> vector<2x128xf32>
    %148 = arith.addf %146, %147 : vector<2x128xf32>
    %149 = arith.negf %148 : vector<2x128xf32>
    %150 = math.exp %149 : vector<2x128xf32>
    %cst_68 = arith.constant 1.000000e+00 : f32
    %151 = vector.broadcast %cst_68 : f32 to vector<2x128xf32>
    %152 = arith.addf %151, %150 : vector<2x128xf32>
    %153 = arith.divf %151, %152 : vector<2x128xf32>
    %154 = math.tanh %148 : vector<2x128xf32>
    %155 = vector.extract_strided_slice %153 {offsets = [0, 0], sizes = [2, 32], strides = [1, 1]} : vector<2x128xf32> to vector<2x32xf32>
    %156 = vector.extract_strided_slice %153 {offsets = [0, 32], sizes = [2, 32], strides = [1, 1]} : vector<2x128xf32> to vector<2x32xf32>
    %157 = vector.extract_strided_slice %154 {offsets = [0, 64], sizes = [2, 32], strides = [1, 1]} : vector<2x128xf32> to vector<2x32xf32>
    %158 = vector.extract_strided_slice %153 {offsets = [0, 96], sizes = [2, 32], strides = [1, 1]} : vector<2x128xf32> to vector<2x32xf32>
    %159 = arith.mulf %156, %129 : vector<2x32xf32>
    %160 = arith.mulf %155, %157 : vector<2x32xf32>
    %161 = arith.addf %159, %160 : vector<2x32xf32>
    %162 = math.tanh %161 : vector<2x32xf32>
    %163 = arith.mulf %158, %162 : vector<2x32xf32>
    %cst_69 = arith.constant dense<0.000000e+00> : vector<2x4xf32>
    %164 = tpu.matmul %163, %1, %cst_69 {dimension_numbers = #tpu.dot_dimension_numbers<[1], [0], [0], [1], [0, 0, 1, 1], [], []>} : vector<2x32xf32>, vector<32x4xf32>, vector<2x4xf32> -> vector<2x4xf32>
    %165 = vector.broadcast %2 : vector<1x4xf32> to vector<2x4xf32>
    %166 = arith.addf %164, %165 : vector<2x4xf32>
    %c4_70 = arith.constant 4 : index
    %c0_71 = arith.constant 0 : index
    %c0_72 = arith.constant 0 : index
    %167 = vector.load %arg10[%c4_70, %c0_71, %c0_72] : memref<8x2x4xf32, #tpu.memory_space<vmem>>, vector<1x2x4xf32>
    %168 = vector.shape_cast %167 : vector<1x2x4xf32> to vector<2x4xf32>
    %169 = vector.shape_cast %166 : vector<2x4xf32> to vector<1x2x4xf32>
    tpu.vector_store %arg10[%c4_70, %c0_71, %c0_72], %169 {strides = array<i32>} : memref<8x2x4xf32, #tpu.memory_space<vmem>>, vector<1x2x4xf32>,
    %c5 = arith.constant 5 : index
    %c0_73 = arith.constant 0 : index
    %c0_74 = arith.constant 0 : index
    %170 = vector.load %arg1[%c5, %c0_73, %c0_74] : memref<8x2x1xf32, #tpu.memory_space<vmem>>, vector<1x2x1xf32>
    %171 = vector.shape_cast %170 : vector<1x2x1xf32> to vector<2x1xf32>
    %c4_75 = arith.constant 4 : index
    %c0_76 = arith.constant 0 : index
    %c0_77 = arith.constant 0 : index
    %172 = vector.load %arg1[%c4_75, %c0_76, %c0_77] : memref<8x2x1xf32, #tpu.memory_space<vmem>>, vector<1x2x1xf32>
    %173 = vector.shape_cast %172 : vector<1x2x1xf32> to vector<2x1xf32>
    %174 = arith.subf %171, %173 : vector<2x1xf32>
    %175 = vector.broadcast %174 : vector<2x1xf32> to vector<2x128xf32>
    %176 = vector.broadcast %5 : vector<1x128xf32> to vector<2x128xf32>
    %177 = arith.mulf %175, %176 : vector<2x128xf32>
    %178 = arith.addf %16, %177 : vector<2x128xf32>
    %cst_78 = arith.constant dense<0.000000e+00> : vector<2x128xf32>
    %179 = tpu.matmul %163, %0, %cst_78 {dimension_numbers = #tpu.dot_dimension_numbers<[1], [0], [0], [1], [0, 0, 1, 1], [], []>} : vector<2x32xf32>, vector<32x128xf32>, vector<2x128xf32> -> vector<2x128xf32>
    %180 = arith.addf %178, %179 : vector<2x128xf32>
    %181 = arith.negf %180 : vector<2x128xf32>
    %182 = math.exp %181 : vector<2x128xf32>
    %cst_79 = arith.constant 1.000000e+00 : f32
    %183 = vector.broadcast %cst_79 : f32 to vector<2x128xf32>
    %184 = arith.addf %183, %182 : vector<2x128xf32>
    %185 = arith.divf %183, %184 : vector<2x128xf32>
    %186 = math.tanh %180 : vector<2x128xf32>
    %187 = vector.extract_strided_slice %185 {offsets = [0, 0], sizes = [2, 32], strides = [1, 1]} : vector<2x128xf32> to vector<2x32xf32>
    %188 = vector.extract_strided_slice %185 {offsets = [0, 32], sizes = [2, 32], strides = [1, 1]} : vector<2x128xf32> to vector<2x32xf32>
    %189 = vector.extract_strided_slice %186 {offsets = [0, 64], sizes = [2, 32], strides = [1, 1]} : vector<2x128xf32> to vector<2x32xf32>
    %190 = vector.extract_strided_slice %185 {offsets = [0, 96], sizes = [2, 32], strides = [1, 1]} : vector<2x128xf32> to vector<2x32xf32>
    %191 = arith.mulf %188, %161 : vector<2x32xf32>
    %192 = arith.mulf %187, %189 : vector<2x32xf32>
    %193 = arith.addf %191, %192 : vector<2x32xf32>
    %194 = math.tanh %193 : vector<2x32xf32>
    %195 = arith.mulf %190, %194 : vector<2x32xf32>
    %cst_80 = arith.constant dense<0.000000e+00> : vector<2x4xf32>
    %196 = tpu.matmul %195, %1, %cst_80 {dimension_numbers = #tpu.dot_dimension_numbers<[1], [0], [0], [1], [0, 0, 1, 1], [], []>} : vector<2x32xf32>, vector<32x4xf32>, vector<2x4xf32> -> vector<2x4xf32>
    %197 = vector.broadcast %2 : vector<1x4xf32> to vector<2x4xf32>
    %198 = arith.addf %196, %197 : vector<2x4xf32>
    %c5_81 = arith.constant 5 : index
    %c0_82 = arith.constant 0 : index
    %c0_83 = arith.constant 0 : index
    %199 = vector.load %arg10[%c5_81, %c0_82, %c0_83] : memref<8x2x4xf32, #tpu.memory_space<vmem>>, vector<1x2x4xf32>
    %200 = vector.shape_cast %199 : vector<1x2x4xf32> to vector<2x4xf32>
    %201 = vector.shape_cast %198 : vector<2x4xf32> to vector<1x2x4xf32>
    tpu.vector_store %arg10[%c5_81, %c0_82, %c0_83], %201 {strides = array<i32>} : memref<8x2x4xf32, #tpu.memory_space<vmem>>, vector<1x2x4xf32>,
    %c6 = arith.constant 6 : index
    %c0_84 = arith.constant 0 : index
    %c0_85 = arith.constant 0 : index
    %202 = vector.load %arg1[%c6, %c0_84, %c0_85] : memref<8x2x1xf32, #tpu.memory_space<vmem>>, vector<1x2x1xf32>
    %203 = vector.shape_cast %202 : vector<1x2x1xf32> to vector<2x1xf32>
    %c5_86 = arith.constant 5 : index
    %c0_87 = arith.constant 0 : index
    %c0_88 = arith.constant 0 : index
    %204 = vector.load %arg1[%c5_86, %c0_87, %c0_88] : memref<8x2x1xf32, #tpu.memory_space<vmem>>, vector<1x2x1xf32>
    %205 = vector.shape_cast %204 : vector<1x2x1xf32> to vector<2x1xf32>
    %206 = arith.subf %203, %205 : vector<2x1xf32>
    %207 = vector.broadcast %206 : vector<2x1xf32> to vector<2x128xf32>
    %208 = vector.broadcast %5 : vector<1x128xf32> to vector<2x128xf32>
    %209 = arith.mulf %207, %208 : vector<2x128xf32>
    %210 = arith.addf %16, %209 : vector<2x128xf32>
    %cst_89 = arith.constant dense<0.000000e+00> : vector<2x128xf32>
    %211 = tpu.matmul %195, %0, %cst_89 {dimension_numbers = #tpu.dot_dimension_numbers<[1], [0], [0], [1], [0, 0, 1, 1], [], []>} : vector<2x32xf32>, vector<32x128xf32>, vector<2x128xf32> -> vector<2x128xf32>
    %212 = arith.addf %210, %211 : vector<2x128xf32>
    %213 = arith.negf %212 : vector<2x128xf32>
    %214 = math.exp %213 : vector<2x128xf32>
    %cst_90 = arith.constant 1.000000e+00 : f32
    %215 = vector.broadcast %cst_90 : f32 to vector<2x128xf32>
    %216 = arith.addf %215, %214 : vector<2x128xf32>
    %217 = arith.divf %215, %216 : vector<2x128xf32>
    %218 = math.tanh %212 : vector<2x128xf32>
    %219 = vector.extract_strided_slice %217 {offsets = [0, 0], sizes = [2, 32], strides = [1, 1]} : vector<2x128xf32> to vector<2x32xf32>
    %220 = vector.extract_strided_slice %217 {offsets = [0, 32], sizes = [2, 32], strides = [1, 1]} : vector<2x128xf32> to vector<2x32xf32>
    %221 = vector.extract_strided_slice %218 {offsets = [0, 64], sizes = [2, 32], strides = [1, 1]} : vector<2x128xf32> to vector<2x32xf32>
    %222 = vector.extract_strided_slice %217 {offsets = [0, 96], sizes = [2, 32], strides = [1, 1]} : vector<2x128xf32> to vector<2x32xf32>
    %223 = arith.mulf %220, %193 : vector<2x32xf32>
    %224 = arith.mulf %219, %221 : vector<2x32xf32>
    %225 = arith.addf %223, %224 : vector<2x32xf32>
    %226 = math.tanh %225 : vector<2x32xf32>
    %227 = arith.mulf %222, %226 : vector<2x32xf32>
    %cst_91 = arith.constant dense<0.000000e+00> : vector<2x4xf32>
    %228 = tpu.matmul %227, %1, %cst_91 {dimension_numbers = #tpu.dot_dimension_numbers<[1], [0], [0], [1], [0, 0, 1, 1], [], []>} : vector<2x32xf32>, vector<32x4xf32>, vector<2x4xf32> -> vector<2x4xf32>
    %229 = vector.broadcast %2 : vector<1x4xf32> to vector<2x4xf32>
    %230 = arith.addf %228, %229 : vector<2x4xf32>
    %c6_92 = arith.constant 6 : index
    %c0_93 = arith.constant 0 : index
    %c0_94 = arith.constant 0 : index
    %231 = vector.load %arg10[%c6_92, %c0_93, %c0_94] : memref<8x2x4xf32, #tpu.memory_space<vmem>>, vector<1x2x4xf32>
    %232 = vector.shape_cast %231 : vector<1x2x4xf32> to vector<2x4xf32>
    %233 = vector.shape_cast %230 : vector<2x4xf32> to vector<1x2x4xf32>
    tpu.vector_store %arg10[%c6_92, %c0_93, %c0_94], %233 {strides = array<i32>} : memref<8x2x4xf32, #tpu.memory_space<vmem>>, vector<1x2x4xf32>,
    %c7 = arith.constant 7 : index
    %c0_95 = arith.constant 0 : index
    %c0_96 = arith.constant 0 : index
    %234 = vector.load %arg1[%c7, %c0_95, %c0_96] : memref<8x2x1xf32, #tpu.memory_space<vmem>>, vector<1x2x1xf32>
    %235 = vector.shape_cast %234 : vector<1x2x1xf32> to vector<2x1xf32>
    %c6_97 = arith.constant 6 : index
    %c0_98 = arith.constant 0 : index
    %c0_99 = arith.constant 0 : index
    %236 = vector.load %arg1[%c6_97, %c0_98, %c0_99] : memref<8x2x1xf32, #tpu.memory_space<vmem>>, vector<1x2x1xf32>
    %237 = vector.shape_cast %236 : vector<1x2x1xf32> to vector<2x1xf32>
    %238 = arith.subf %235, %237 : vector<2x1xf32>
    %239 = vector.broadcast %238 : vector<2x1xf32> to vector<2x128xf32>
    %240 = vector.broadcast %5 : vector<1x128xf32> to vector<2x128xf32>
    %241 = arith.mulf %239, %240 : vector<2x128xf32>
    %242 = arith.addf %16, %241 : vector<2x128xf32>
    %cst_100 = arith.constant dense<0.000000e+00> : vector<2x128xf32>
    %243 = tpu.matmul %227, %0, %cst_100 {dimension_numbers = #tpu.dot_dimension_numbers<[1], [0], [0], [1], [0, 0, 1, 1], [], []>} : vector<2x32xf32>, vector<32x128xf32>, vector<2x128xf32> -> vector<2x128xf32>
    %244 = arith.addf %242, %243 : vector<2x128xf32>
    %245 = arith.negf %244 : vector<2x128xf32>
    %246 = math.exp %245 : vector<2x128xf32>
    %cst_101 = arith.constant 1.000000e+00 : f32
    %247 = vector.broadcast %cst_101 : f32 to vector<2x128xf32>
    %248 = arith.addf %247, %246 : vector<2x128xf32>
    %249 = arith.divf %247, %248 : vector<2x128xf32>
    %250 = math.tanh %244 : vector<2x128xf32>
    %251 = vector.extract_strided_slice %249 {offsets = [0, 0], sizes = [2, 32], strides = [1, 1]} : vector<2x128xf32> to vector<2x32xf32>
    %252 = vector.extract_strided_slice %249 {offsets = [0, 32], sizes = [2, 32], strides = [1, 1]} : vector<2x128xf32> to vector<2x32xf32>
    %253 = vector.extract_strided_slice %250 {offsets = [0, 64], sizes = [2, 32], strides = [1, 1]} : vector<2x128xf32> to vector<2x32xf32>
    %254 = vector.extract_strided_slice %249 {offsets = [0, 96], sizes = [2, 32], strides = [1, 1]} : vector<2x128xf32> to vector<2x32xf32>
    %255 = arith.mulf %252, %225 : vector<2x32xf32>
    %256 = arith.mulf %251, %253 : vector<2x32xf32>
    %257 = arith.addf %255, %256 : vector<2x32xf32>
    %258 = math.tanh %257 : vector<2x32xf32>
    %259 = arith.mulf %254, %258 : vector<2x32xf32>
    %cst_102 = arith.constant dense<0.000000e+00> : vector<2x4xf32>
    %260 = tpu.matmul %259, %1, %cst_102 {dimension_numbers = #tpu.dot_dimension_numbers<[1], [0], [0], [1], [0, 0, 1, 1], [], []>} : vector<2x32xf32>, vector<32x4xf32>, vector<2x4xf32> -> vector<2x4xf32>
    %261 = vector.broadcast %2 : vector<1x4xf32> to vector<2x4xf32>
    %262 = arith.addf %260, %261 : vector<2x4xf32>
    %c7_103 = arith.constant 7 : index
    %c0_104 = arith.constant 0 : index
    %c0_105 = arith.constant 0 : index
    %263 = vector.load %arg10[%c7_103, %c0_104, %c0_105] : memref<8x2x4xf32, #tpu.memory_space<vmem>>, vector<1x2x4xf32>
    %264 = vector.shape_cast %263 : vector<1x2x4xf32> to vector<2x4xf32>
    %265 = vector.shape_cast %262 : vector<2x4xf32> to vector<1x2x4xf32>
    tpu.vector_store %arg10[%c7_103, %c0_104, %c0_105], %265 {strides = array<i32>} : memref<8x2x4xf32, #tpu.memory_space<vmem>>, vector<1x2x4xf32>,
    return
  }
}

</mosaic_0001>

<llo_original>
// kernel: tpu_custom_call.1
$region0: #{tpu_custom_call.1}
  #allocation0 [shape = 'u32[]', space=smem, size = 0x4, offset = 0x4, fixed_abs, tag = 'smem constant byte address 0x4 - core index']
  #allocation1 [shape = 'u32[72,128]{1,0:T(1,128)}', space=vmem, size = 0x9000, scoped, tag = 'internal scratch']
  %s0 = inlined_call_operand.vmem [shape: f32[2,32], index: 0, kind: input, shape index: {}]
  %s1 = inlined_call_operand.vmem [shape: f32[8,2,1], index: 1, kind: input, shape index: {}]
  %s2 = inlined_call_operand.vmem [shape: f32[32,128], index: 2, kind: input, shape index: {}]
  %s3 = inlined_call_operand.hbm [shape: f32[32,128], index: 3, kind: input, shape index: {}]
  %s4 = inlined_call_operand.hbm [shape: f32[32,128], index: 4, kind: input, shape index: {}]
  %s5 = inlined_call_operand.vmem [shape: f32[1,128], index: 5, kind: input, shape index: {}]
  %s6 = inlined_call_operand.vmem [shape: f32[1,32], index: 6, kind: input, shape index: {}]
  %s7 = inlined_call_operand.vmem [shape: f32[1,32], index: 7, kind: input, shape index: {}]
  %s8 = inlined_call_operand.vmem [shape: f32[32,4], index: 8, kind: input, shape index: {}]
  %s9 = inlined_call_operand.vmem [shape: f32[1,4], index: 9, kind: input, shape index: {}]
  %s10 = inlined_call_operand.vmem [shape: f32[8,2,4], index: 10, kind: output, shape index: {}]
  %s11 = sld [smem:[#allocation0]]
  $region58: #{tpu_custom_call.1} parent=0
    _
  %s13 = ssub.s32 1, %s11
  %s14 = scalar_select 0, %s13, %s11
  $region1: #{tpu_custom_call.1} parent=0
    #allocation2 [shape = 'u8[16384]{0}', space=vmem, size = 0x4000, scoped, tag = 'input window, operand 3, single buffered']
    #allocation3 [shape = 's32[1]{0}', space=sflag, size = 0x4, scoped, tag = 'scoped memory for tpu_custom_call.1']
    #allocation4 [shape = 'u8[16384]{0}', space=vmem, size = 0x4000, scoped, tag = 'input window, operand 4, single buffered']
    #allocation5 [shape = 's32[1]{0}', space=sflag, size = 0x4, scoped, tag = 'scoped memory for tpu_custom_call.1']
    %15 = vsyncpa [#allocation3], 0
    %16 = vsyncpa [#allocation5], 0
    // Predicated region
    $region2: #{tpu_custom_call.1} parent=1 // pred_check
      _
    $region3: #{tpu_custom_call.1} parent=1 // pred_check_branch
      %18 = sbr.rel (0) target = $region5
    $region4: #{tpu_custom_call.1} parent=1 // pred_region
      _
    $region5: #{tpu_custom_call.1} parent=1 // pred_fallthru
      _
    // Predicated region
    $region6: #{tpu_custom_call.1} parent=1 // pred_check
      _
    $region7: #{tpu_custom_call.1} parent=1 // pred_check_branch
      %20 = sbr.rel (0) target = $region9
    $region8: #{tpu_custom_call.1} parent=1 // pred_region
      _
    $region9: #{tpu_custom_call.1} parent=1 // pred_fallthru
      _
    // Predicated region
    $region10: #{tpu_custom_call.1} parent=1 // pred_check
      _
    $region11: #{tpu_custom_call.1} parent=1 // pred_check_branch
      %22 = sbr.rel (0) target = $region13
    $region12: #{tpu_custom_call.1} parent=1 // pred_region
      _
    $region13: #{tpu_custom_call.1} parent=1 // pred_fallthru
      _
    // Predicated region
    $region14: #{tpu_custom_call.1} parent=1 // pred_check
      _
    $region15: #{tpu_custom_call.1} parent=1 // pred_check_branch
      %24 = sbr.rel (0) target = $region17
    $region16: #{tpu_custom_call.1} parent=1 // pred_region
      %26 = vsyncadd [#allocation3], 0
      %s27 = sshll.u32 %s3, 4
      %s28 = int_to_ptr.hbm [resolvable:$true] %s27
      %s29 = sshll.u32 [#allocation2], 4
      %s30 = int_to_ptr.vmem [resolvable:$true] %s29
      %35 = dma.hbm_to_vmem [thread:$0]  %s28, 512, %s30, [#allocation3], 128, 128, 8
    $region17: #{tpu_custom_call.1} parent=1 // pred_fallthru
      _
    // Predicated region
    $region18: #{tpu_custom_call.1} parent=1 // pred_check
      _
    $region19: #{tpu_custom_call.1} parent=1 // pred_check_branch
      %37 = sbr.rel (0) target = $region21
    $region20: #{tpu_custom_call.1} parent=1 // pred_region
      %39 = vsyncadd [#allocation5], 0
      %s40 = sshll.u32 %s4, 4
      %s41 = int_to_ptr.hbm [resolvable:$true] %s40
      %s42 = sshll.u32 [#allocation4], 4
      %s43 = int_to_ptr.vmem [resolvable:$true] %s42
      %48 = dma.hbm_to_vmem [thread:$0]  %s41, 512, %s43, [#allocation5], 128, 128, 8
    $region21: #{tpu_custom_call.1} parent=1 // pred_fallthru
      _
    // Predicated region
    $region22: #{tpu_custom_call.1} parent=1 // pred_check
      _
    $region23: #{tpu_custom_call.1} parent=1 // pred_check_branch
      %50 = sbr.rel (0) target = $region25
    $region24: #{tpu_custom_call.1} parent=1 // pred_region
      _
    $region25: #{tpu_custom_call.1} parent=1 // pred_fallthru
      _
    // Predicated region
    $region26: #{tpu_custom_call.1} parent=1 // pred_check
      _
    $region27: #{tpu_custom_call.1} parent=1 // pred_check_branch
      %52 = sbr.rel (0) target = $region29
    $region28: #{tpu_custom_call.1} parent=1 // pred_region
      _
    $region29: #{tpu_custom_call.1} parent=1 // pred_fallthru
      _
    // Predicated region
    $region30: #{tpu_custom_call.1} parent=1 // pred_check
      _
    $region31: #{tpu_custom_call.1} parent=1 // pred_check_branch
      %54 = sbr.rel (0) target = $region33
    $region32: #{tpu_custom_call.1} parent=1 // pred_region
      _
    $region33: #{tpu_custom_call.1} parent=1 // pred_fallthru
      _
    // Predicated region
    $region34: #{tpu_custom_call.1} parent=1 // pred_check
      _
    $region35: #{tpu_custom_call.1} parent=1 // pred_check_branch
      %56 = sbr.rel (0) target = $region37
    $region36: #{tpu_custom_call.1} parent=1 // pred_region
      _
    $region37: #{tpu_custom_call.1} parent=1 // pred_fallthru
      _
    // Predicated region
    $region38: #{tpu_custom_call.1} parent=1 // pred_check
      _
    $region39: #{tpu_custom_call.1} parent=1 // pred_check_branch
      %58 = sbr.rel (0) target = $region41
    $region40: #{tpu_custom_call.1} parent=1 // pred_region
      _
    $region41: #{tpu_custom_call.1} parent=1 // pred_fallthru
      _
    // Predicated region
    $region42: #{tpu_custom_call.1} parent=1 // pred_check
      _
    $region43: #{tpu_custom_call.1} parent=1 // pred_check_branch
      %60 = sbr.rel (0) target = $region45
    $region44: #{tpu_custom_call.1} parent=1 // pred_region
      %62 = dma.done [#allocation3], 512
    $region45: #{tpu_custom_call.1} parent=1 // pred_fallthru
      _
    // Predicated region
    $region46: #{tpu_custom_call.1} parent=1 // pred_check
      _
    $region47: #{tpu_custom_call.1} parent=1 // pred_check_branch
      %64 = sbr.rel (0) target = $region49
    $region48: #{tpu_custom_call.1} parent=1 // pred_region
      %66 = dma.done [#allocation5], 512
    $region49: #{tpu_custom_call.1} parent=1 // pred_fallthru
      _
    %v67 = vld [vmem:[#allocation4] sm:$0xff]
    %v68 = vld [vmem:[#allocation4 + $0x8] sm:$0xff]
    %v69 = vld [vmem:[#allocation4 + $0x10] sm:$0xff]
    %v70 = vld [vmem:[#allocation4 + $0x18] sm:$0xff]
    %v71 = vld [vmem:[%s8] sm:$0xff]
    %v72 = vld [vmem:[%s8 + $0x8] sm:$0xff]
    %v73 = vld [vmem:[%s8 + $0x10] sm:$0xff]
    %v74 = vld [vmem:[%s8 + $0x18] sm:$0xff]
    %v75 = vld [vmem:[%s9] sm:$0x1]
    %v76 = vld [vmem:[%s6] sm:$0x1]
    %v77 = vld [vmem:[#allocation2] sm:$0xff]
    %v78 = vld [vmem:[#allocation2 + $0x8] sm:$0xff]
    %v79 = vld [vmem:[#allocation2 + $0x10] sm:$0xff]
    %v80 = vld [vmem:[#allocation2 + $0x18] sm:$0xff]
    %vm81 = vcmask 261120
    %v83 = vsel %vm81, %v76, 0
    %85 = vmatpush.msra.mxu0 0.0
    %86 = vmatpush.msra.mxu0 0.0
    %87 = vmatpush.msra.mxu0 0.0
    %88 = vmatpush.msra.mxu0 0.0
    %89 = vmatpush.msra.mxu0 0.0
    %90 = vmatpush.msra.mxu0 0.0
    %91 = vmatpush.msra.mxu0 0.0
    %92 = vmatpush.msra.mxu0 0.0
    %93 = vmatpush.msra.mxu0 0.0
    %94 = vmatpush.msra.mxu0 0.0
    %95 = vmatpush.msra.mxu0 0.0
    %96 = vmatpush.msra.mxu0 0.0
    %97 = vmatpush.msra.mxu0 %v80
    %98 = vmatpush.msra.mxu0 %v79
    %99 = vmatpush.msra.mxu0 %v78
    %100 = vmatpush.msra.mxu0 %v77
    %101 = vmatmul.f32.gmra.mxu0 %v83
    %v102 = vpop.f32.mrf.mxu0
    %v103 = vadd.f32 0.0, %v102
    %104 = vdwg.mxu0
    %v105 = vld [vmem:[%s7] sm:$0x1]
    %v107 = vsel %vm81, %v105, 0
    %109 = vmatpush.msra.mxu0 0.0
    %110 = vmatpush.msra.mxu0 0.0
    %111 = vmatpush.msra.mxu0 0.0
    %112 = vmatpush.msra.mxu0 0.0
    %113 = vmatpush.msra.mxu0 0.0
    %114 = vmatpush.msra.mxu0 0.0
    %115 = vmatpush.msra.mxu0 0.0
    %116 = vmatpush.msra.mxu0 0.0
    %117 = vmatpush.msra.mxu0 0.0
    %118 = vmatpush.msra.mxu0 0.0
    %119 = vmatpush.msra.mxu0 0.0
    %120 = vmatpush.msra.mxu0 0.0
    %121 = vmatpush.msra.mxu0 %v80
    %122 = vmatpush.msra.mxu0 %v79
    %123 = vmatpush.msra.mxu0 %v78
    %124 = vmatpush.msra.mxu0 %v77
    %125 = vmatmul.f32.gmra.mxu0 %v107
    %v126 = vpop.f32.mrf.mxu0
    %v127 = vadd.f32 0.0, %v126
    %128 = vdwg.mxu0
    %v129 = vld [vmem:[%s0] sm:$0x3]
    %v130 = vld [vmem:[%s2] sm:$0xff]
    %v131 = vld [vmem:[%s2 + $0x8] sm:$0xff]
    %v132 = vld [vmem:[%s2 + $0x10] sm:$0xff]
    %v133 = vld [vmem:[%s2 + $0x18] sm:$0xff]
    %v134 = vld [vmem:[%s5] sm:$0x1]
    %v136 = vperm.slane %v134, 0
    %v139 = vsel %vm81, %v129, 0
    %141 = vmatpush.msra.mxu0 0.0
    %142 = vmatpush.msra.mxu0 0.0
    %143 = vmatpush.msra.mxu0 0.0
    %144 = vmatpush.msra.mxu0 0.0
    %145 = vmatpush.msra.mxu0 0.0
    %146 = vmatpush.msra.mxu0 0.0
    %147 = vmatpush.msra.mxu0 0.0
    %148 = vmatpush.msra.mxu0 0.0
    %149 = vmatpush.msra.mxu0 0.0
    %150 = vmatpush.msra.mxu0 0.0
    %151 = vmatpush.msra.mxu0 0.0
    %152 = vmatpush.msra.mxu0 0.0
    %153 = vmatpush.msra.mxu0 %v133
    %154 = vmatpush.msra.mxu0 %v132
    %155 = vmatpush.msra.mxu0 %v131
    %156 = vmatpush.msra.mxu0 %v130
    %157 = vmatmul.f32.gmra.mxu0 %v139
    %v158 = vpop.f32.mrf.mxu0
    %v159 = vadd.f32 %v136, %v158
    %160 = vdwg.mxu0
    %v161 = vperm.slane %v127, 0
    %v162 = vadd.f32 %v159, %v161
    %v164 = vsel %vm81, 0.0, 0
    %166 = vmatpush.msra.mxu0 0.0
    %167 = vmatpush.msra.mxu0 0.0
    %168 = vmatpush.msra.mxu0 0.0
    %169 = vmatpush.msra.mxu0 0.0
    %170 = vmatpush.msra.mxu0 0.0
    %171 = vmatpush.msra.mxu0 0.0
    %172 = vmatpush.msra.mxu0 0.0
    %173 = vmatpush.msra.mxu0 0.0
    %174 = vmatpush.msra.mxu0 0.0
    %175 = vmatpush.msra.mxu0 0.0
    %176 = vmatpush.msra.mxu0 0.0
    %177 = vmatpush.msra.mxu0 0.0
    %178 = vmatpush.msra.mxu0 %v70
    %179 = vmatpush.msra.mxu0 %v69
    %180 = vmatpush.msra.mxu0 %v68
    %181 = vmatpush.msra.mxu0 %v67
    %182 = vmatmul.f32.gmra.mxu0 %v164
    %v183 = vpop.f32.mrf.mxu0
    %v184 = vadd.f32 0.0, %v183
    %185 = vdwg.mxu0
    %v186 = vadd.f32 %v162, %v184
    %v187 = vxor.u32 %v186, 2147483648
    %v188 = vmul.f32 %v187, 1.442695
    %v189 = vpow.pop %v188
    %v190 = vadd.f32 %v189, 1.0
    %v191 = vrcp.pop %v190
    %v192 = vmul.f32 %v190, %v191
    %v193 = vsub.f32 1.0, %v192
    %v194 = vmul.f32 %v191, %v193
    %v195 = vadd.f32 %v191, %v194
    %vm196 = vweird.f32 %v190
    %vm197 = vweird.f32 %v191
    %vm198 = vmor %vm196, %vm197
    %v199 = vsel %vm198, %v191, %v195
    %v200 = vand.u32 2147483647, %v190
    %vm201 = vcmp.eq.f32.partialorder %v200, 8.507059e+37
    %v202 = vand.u32 %v190, 2147483648
    %v203 = vor.u32 1.1754944e-38, %v202
    %v204 = vsel %vm201, %v203, %v199
    %v205 = vmul.f32 1.0, %v204
    %v206 = vtanh.pop %v186
    %v207 = vmul.f32 %v205, 0.0
    %209 = vrot.lane.b32.xlu0 %v206, 64
    %v210 = vpop.permute.xlu0 %209
    %v212 = vmul.f32 %v205, %v210
    %214 = vrot.lane.b32.xlu0 %v212, 32
    %v215 = vpop.permute.xlu0 %214
    %v217 = vadd.f32 %v207, %v215
    %v218 = vtanh.pop %v217
    %220 = vrot.lane.b32.xlu0 %v218, 64
    %v221 = vpop.permute.xlu0 %220
    %v223 = vmul.f32 %v205, %v221
    %v225 = vperm.slane %v75, 0
    %228 = vrot.lane.b32.xlu0 %v223, 32
    %v229 = vpop.permute.xlu0 %228
    %v230 = vsel %vm81, %v229, 0
    %232 = vmatpush.msra.mxu0 0.0
    %233 = vmatpush.msra.mxu0 0.0
    %234 = vmatpush.msra.mxu0 0.0
    %235 = vmatpush.msra.mxu0 0.0
    %236 = vmatpush.msra.mxu0 0.0
    %237 = vmatpush.msra.mxu0 0.0
    %238 = vmatpush.msra.mxu0 0.0
    %239 = vmatpush.msra.mxu0 0.0
    %240 = vmatpush.msra.mxu0 0.0
    %241 = vmatpush.msra.mxu0 0.0
    %242 = vmatpush.msra.mxu0 0.0
    %243 = vmatpush.msra.mxu0 0.0
    %244 = vmatpush.msra.mxu0 %v74
    %245 = vmatpush.msra.mxu0 %v73
    %246 = vmatpush.msra.mxu0 %v72
    %247 = vmatpush.msra.mxu0 %v71
    %248 = vmatmul.f32.gmra.mxu0 %v230
    %v249 = vpop.f32.mrf.mxu0
    %v250 = vadd.f32 %v225, %v249
    %251 = vdwg.mxu0
    %vm252 = vcmask 25600
    %253 = vst.msk [vmem:[%s10] sm:$0x3] %vm252, %v250
    %s254 = scalar_lea.vmem %s1, 2
    %v255 = vld [vmem:[%s254] sm:$0x3]
    %v256 = vld [vmem:[%s1] sm:$0x3]
    %v257 = vsub.f32 %v255, %v256
    %259 = vset.pattern.permute.xlu0 0
    %260 = vperm.xlu0 %259, %v257
    %v261 = vpop.permute.xlu0 %260
    %v263 = vperm.slane %v103, 0
    %v264 = vmul.f32 %v261, %v263
    %v265 = vadd.f32 %v162, %v264
    %266 = vmatpush.msra.mxu0 0.0
    %267 = vmatpush.msra.mxu0 0.0
    %268 = vmatpush.msra.mxu0 0.0
    %269 = vmatpush.msra.mxu0 0.0
    %270 = vmatpush.msra.mxu0 0.0
    %271 = vmatpush.msra.mxu0 0.0
    %272 = vmatpush.msra.mxu0 0.0
    %273 = vmatpush.msra.mxu0 0.0
    %274 = vmatpush.msra.mxu0 0.0
    %275 = vmatpush.msra.mxu0 0.0
    %276 = vmatpush.msra.mxu0 0.0
    %277 = vmatpush.msra.mxu0 0.0
    %278 = vmatpush.msra.mxu0 %v70
    %279 = vmatpush.msra.mxu0 %v69
    %280 = vmatpush.msra.mxu0 %v68
    %281 = vmatpush.msra.mxu0 %v67
    %282 = vmatmul.f32.gmra.mxu0 %v230
    %v283 = vpop.f32.mrf.mxu0
    %v284 = vadd.f32 0.0, %v283
    %285 = vdwg.mxu0
    %v286 = vadd.f32 %v265, %v284
    %v287 = vxor.u32 %v286, 2147483648
    %v288 = vmul.f32 %v287, 1.442695
    %v289 = vpow.pop %v288
    %v290 = vadd.f32 %v289, 1.0
    %v291 = vrcp.pop %v290
    %v292 = vmul.f32 %v290, %v291
    %v293 = vsub.f32 1.0, %v292
    %v294 = vmul.f32 %v291, %v293
    %v295 = vadd.f32 %v291, %v294
    %vm296 = vweird.f32 %v290
    %vm297 = vweird.f32 %v291
    %vm298 = vmor %vm296, %vm297
    %v299 = vsel %vm298, %v291, %v295
    %v300 = vand.u32 2147483647, %v290
    %vm301 = vcmp.eq.f32.partialorder %v300, 8.507059e+37
    %v302 = vand.u32 %v290, 2147483648
    %v303 = vor.u32 1.1754944e-38, %v302
    %v304 = vsel %vm301, %v303, %v299
    %v305 = vmul.f32 1.0, %v304
    %v306 = vtanh.pop %v286
    %v307 = vmul.f32 %v305, %v217
    %309 = vrot.lane.b32.xlu0 %v306, 64
    %v310 = vpop.permute.xlu0 %309
    %v312 = vmul.f32 %v305, %v310
    %314 = vrot.lane.b32.xlu0 %v312, 32
    %v315 = vpop.permute.xlu0 %314
    %v317 = vadd.f32 %v307, %v315
    %v318 = vtanh.pop %v317
    %320 = vrot.lane.b32.xlu0 %v318, 64
    %v321 = vpop.permute.xlu0 %320
    %v323 = vmul.f32 %v305, %v321
    %325 = vrot.lane.b32.xlu0 %v323, 32
    %v326 = vpop.permute.xlu0 %325
    %v327 = vsel %vm81, %v326, 0
    %329 = vmatpush.msra.mxu0 0.0
    %330 = vmatpush.msra.mxu0 0.0
    %331 = vmatpush.msra.mxu0 0.0
    %332 = vmatpush.msra.mxu0 0.0
    %333 = vmatpush.msra.mxu0 0.0
    %334 = vmatpush.msra.mxu0 0.0
    %335 = vmatpush.msra.mxu0 0.0
    %336 = vmatpush.msra.mxu0 0.0
    %337 = vmatpush.msra.mxu0 0.0
    %338 = vmatpush.msra.mxu0 0.0
    %339 = vmatpush.msra.mxu0 0.0
    %340 = vmatpush.msra.mxu0 0.0
    %341 = vmatpush.msra.mxu0 %v74
    %342 = vmatpush.msra.mxu0 %v73
    %343 = vmatpush.msra.mxu0 %v72
    %344 = vmatpush.msra.mxu0 %v71
    %345 = vmatmul.f32.gmra.mxu0 %v327
    %v346 = vpop.f32.mrf.mxu0
    %v347 = vadd.f32 %v225, %v346
    %348 = vdwg.mxu0
    %s349 = scalar_lea.vmem %s10, 2
    %350 = vst.msk [vmem:[%s349] sm:$0x3] %vm252, %v347
    %s351 = scalar_lea.vmem %s1, 4
    %v352 = vld [vmem:[%s351] sm:$0x3]
    %v353 = vld [vmem:[%s254] sm:$0x3]
    %v354 = vsub.f32 %v352, %v353
    %356 = vset.pattern.permute.xlu0 0
    %357 = vperm.xlu0 %356, %v354
    %v358 = vpop.permute.xlu0 %357
    %v360 = vmul.f32 %v358, %v263
    %v361 = vadd.f32 %v162, %v360
    %362 = vmatpush.msra.mxu0 0.0
    %363 = vmatpush.msra.mxu0 0.0
    %364 = vmatpush.msra.mxu0 0.0
    %365 = vmatpush.msra.mxu0 0.0
    %366 = vmatpush.msra.mxu0 0.0
    %367 = vmatpush.msra.mxu0 0.0
    %368 = vmatpush.msra.mxu0 0.0
    %369 = vmatpush.msra.mxu0 0.0
    %370 = vmatpush.msra.mxu0 0.0
    %371 = vmatpush.msra.mxu0 0.0
    %372 = vmatpush.msra.mxu0 0.0
    %373 = vmatpush.msra.mxu0 0.0
    %374 = vmatpush.msra.mxu0 %v70
    %375 = vmatpush.msra.mxu0 %v69
    %376 = vmatpush.msra.mxu0 %v68
    %377 = vmatpush.msra.mxu0 %v67
    %378 = vmatmul.f32.gmra.mxu0 %v327
    %v379 = vpop.f32.mrf.mxu0
    %v380 = vadd.f32 0.0, %v379
    %381 = vdwg.mxu0
    %v382 = vadd.f32 %v361, %v380
    %v383 = vxor.u32 %v382, 2147483648
    %v384 = vmul.f32 %v383, 1.442695
    %v385 = vpow.pop %v384
    %v386 = vadd.f32 %v385, 1.0
    %v387 = vrcp.pop %v386
    %v388 = vmul.f32 %v386, %v387
    %v389 = vsub.f32 1.0, %v388
    %v390 = vmul.f32 %v387, %v389
    %v391 = vadd.f32 %v387, %v390
    %vm392 = vweird.f32 %v386
    %vm393 = vweird.f32 %v387
    %vm394 = vmor %vm392, %vm393
    %v395 = vsel %vm394, %v387, %v391
    %v396 = vand.u32 2147483647, %v386
    %vm397 = vcmp.eq.f32.partialorder %v396, 8.507059e+37
    %v398 = vand.u32 %v386, 2147483648
    %v399 = vor.u32 1.1754944e-38, %v398
    %v400 = vsel %vm397, %v399, %v395
    %v401 = vmul.f32 1.0, %v400
    %v402 = vtanh.pop %v382
    %v403 = vmul.f32 %v401, %v317
    %405 = vrot.lane.b32.xlu0 %v402, 64
    %v406 = vpop.permute.xlu0 %405
    %v408 = vmul.f32 %v401, %v406
    %410 = vrot.lane.b32.xlu0 %v408, 32
    %v411 = vpop.permute.xlu0 %410
    %v413 = vadd.f32 %v403, %v411
    %v414 = vtanh.pop %v413
    %416 = vrot.lane.b32.xlu0 %v414, 64
    %v417 = vpop.permute.xlu0 %416
    %v419 = vmul.f32 %v401, %v417
    %421 = vrot.lane.b32.xlu0 %v419, 32
    %v422 = vpop.permute.xlu0 %421
    %v423 = vsel %vm81, %v422, 0
    %425 = vmatpush.msra.mxu0 0.0
    %426 = vmatpush.msra.mxu0 0.0
    %427 = vmatpush.msra.mxu0 0.0
    %428 = vmatpush.msra.mxu0 0.0
    %429 = vmatpush.msra.mxu0 0.0
    %430 = vmatpush.msra.mxu0 0.0
    %431 = vmatpush.msra.mxu0 0.0
    %432 = vmatpush.msra.mxu0 0.0
    %433 = vmatpush.msra.mxu0 0.0
    %434 = vmatpush.msra.mxu0 0.0
    %435 = vmatpush.msra.mxu0 0.0
    %436 = vmatpush.msra.mxu0 0.0
    %437 = vmatpush.msra.mxu0 %v74
    %438 = vmatpush.msra.mxu0 %v73
    %439 = vmatpush.msra.mxu0 %v72
    %440 = vmatpush.msra.mxu0 %v71
    %441 = vmatmul.f32.gmra.mxu0 %v423
    %v442 = vpop.f32.mrf.mxu0
    %v443 = vadd.f32 %v225, %v442
    %444 = vdwg.mxu0
    %s445 = scalar_lea.vmem %s10, 4
    %446 = vst.msk [vmem:[%s445] sm:$0x3] %vm252, %v443
    %s447 = scalar_lea.vmem %s1, 6
    %v448 = vld [vmem:[%s447] sm:$0x3]
    %v449 = vld [vmem:[%s351] sm:$0x3]
    %v450 = vsub.f32 %v448, %v449
    %452 = vset.pattern.permute.xlu0 0
    %453 = vperm.xlu0 %452, %v450
    %v454 = vpop.permute.xlu0 %453
    %v456 = vmul.f32 %v454, %v263
    %v457 = vadd.f32 %v162, %v456
    %458 = vmatpush.msra.mxu0 0.0
    %459 = vmatpush.msra.mxu0 0.0
    %460 = vmatpush.msra.mxu0 0.0
    %461 = vmatpush.msra.mxu0 0.0
    %462 = vmatpush.msra.mxu0 0.0
    %463 = vmatpush.msra.mxu0 0.0
    %464 = vmatpush.msra.mxu0 0.0
    %465 = vmatpush.msra.mxu0 0.0
    %466 = vmatpush.msra.mxu0 0.0
    %467 = vmatpush.msra.mxu0 0.0
    %468 = vmatpush.msra.mxu0 0.0
    %469 = vmatpush.msra.mxu0 0.0
    %470 = vmatpush.msra.mxu0 %v70
    %471 = vmatpush.msra.mxu0 %v69
    %472 = vmatpush.msra.mxu0 %v68
    %473 = vmatpush.msra.mxu0 %v67
    %474 = vmatmul.f32.gmra.mxu0 %v423
    %v475 = vpop.f32.mrf.mxu0
    %v476 = vadd.f32 0.0, %v475
    %477 = vdwg.mxu0
    %v478 = vadd.f32 %v457, %v476
    %v479 = vxor.u32 %v478, 2147483648
    %v480 = vmul.f32 %v479, 1.442695
    %v481 = vpow.pop %v480
    %v482 = vadd.f32 %v481, 1.0
    %v483 = vrcp.pop %v482
    %v484 = vmul.f32 %v482, %v483
    %v485 = vsub.f32 1.0, %v484
    %v486 = vmul.f32 %v483, %v485
    %v487 = vadd.f32 %v483, %v486
    %vm488 = vweird.f32 %v482
    %vm489 = vweird.f32 %v483
    %vm490 = vmor %vm488, %vm489
    %v491 = vsel %vm490, %v483, %v487
    %v492 = vand.u32 2147483647, %v482
    %vm493 = vcmp.eq.f32.partialorder %v492, 8.507059e+37
    %v494 = vand.u32 %v482, 2147483648
    %v495 = vor.u32 1.1754944e-38, %v494
    %v496 = vsel %vm493, %v495, %v491
    %v497 = vmul.f32 1.0, %v496
    %v498 = vtanh.pop %v478
    %v499 = vmul.f32 %v497, %v413
    %501 = vrot.lane.b32.xlu0 %v498, 64
    %v502 = vpop.permute.xlu0 %501
    %v504 = vmul.f32 %v497, %v502
    %506 = vrot.lane.b32.xlu0 %v504, 32
    %v507 = vpop.permute.xlu0 %506
    %v509 = vadd.f32 %v499, %v507
    %v510 = vtanh.pop %v509
    %512 = vrot.lane.b32.xlu0 %v510, 64
    %v513 = vpop.permute.xlu0 %512
    %v515 = vmul.f32 %v497, %v513
    %517 = vrot.lane.b32.xlu0 %v515, 32
    %v518 = vpop.permute.xlu0 %517
    %v519 = vsel %vm81, %v518, 0
    %521 = vmatpush.msra.mxu0 0.0
    %522 = vmatpush.msra.mxu0 0.0
    %523 = vmatpush.msra.mxu0 0.0
    %524 = vmatpush.msra.mxu0 0.0
    %525 = vmatpush.msra.mxu0 0.0
    %526 = vmatpush.msra.mxu0 0.0
    %527 = vmatpush.msra.mxu0 0.0
    %528 = vmatpush.msra.mxu0 0.0
    %529 = vmatpush.msra.mxu0 0.0
    %530 = vmatpush.msra.mxu0 0.0
    %531 = vmatpush.msra.mxu0 0.0
    %532 = vmatpush.msra.mxu0 0.0
    %533 = vmatpush.msra.mxu0 %v74
    %534 = vmatpush.msra.mxu0 %v73
    %535 = vmatpush.msra.mxu0 %v72
    %536 = vmatpush.msra.mxu0 %v71
    %537 = vmatmul.f32.gmra.mxu0 %v519
    %v538 = vpop.f32.mrf.mxu0
    %v539 = vadd.f32 %v225, %v538
    %540 = vdwg.mxu0
    %s541 = scalar_lea.vmem %s10, 6
    %542 = vst.msk [vmem:[%s541] sm:$0x3] %vm252, %v539
    %s543 = scalar_lea.vmem %s1, 8
    %v544 = vld [vmem:[%s543] sm:$0x3]
    %v545 = vld [vmem:[%s447] sm:$0x3]
    %v546 = vsub.f32 %v544, %v545
    %548 = vset.pattern.permute.xlu0 0
    %549 = vperm.xlu0 %548, %v546
    %v550 = vpop.permute.xlu0 %549
    %v552 = vmul.f32 %v550, %v263
    %v553 = vadd.f32 %v162, %v552
    %554 = vmatpush.msra.mxu0 0.0
    %555 = vmatpush.msra.mxu0 0.0
    %556 = vmatpush.msra.mxu0 0.0
    %557 = vmatpush.msra.mxu0 0.0
    %558 = vmatpush.msra.mxu0 0.0
    %559 = vmatpush.msra.mxu0 0.0
    %560 = vmatpush.msra.mxu0 0.0
    %561 = vmatpush.msra.mxu0 0.0
    %562 = vmatpush.msra.mxu0 0.0
    %563 = vmatpush.msra.mxu0 0.0
    %564 = vmatpush.msra.mxu0 0.0
    %565 = vmatpush.msra.mxu0 0.0
    %566 = vmatpush.msra.mxu0 %v70
    %567 = vmatpush.msra.mxu0 %v69
    %568 = vmatpush.msra.mxu0 %v68
    %569 = vmatpush.msra.mxu0 %v67
    %570 = vmatmul.f32.gmra.mxu0 %v519
    %v571 = vpop.f32.mrf.mxu0
    %v572 = vadd.f32 0.0, %v571
    %573 = vdwg.mxu0
    %v574 = vadd.f32 %v553, %v572
    %v575 = vxor.u32 %v574, 2147483648
    %v576 = vmul.f32 %v575, 1.442695
    %v577 = vpow.pop %v576
    %v578 = vadd.f32 %v577, 1.0
    %v579 = vrcp.pop %v578
    %v580 = vmul.f32 %v578, %v579
    %v581 = vsub.f32 1.0, %v580
    %v582 = vmul.f32 %v579, %v581
    %v583 = vadd.f32 %v579, %v582
    %vm584 = vweird.f32 %v578
    %vm585 = vweird.f32 %v579
    %vm586 = vmor %vm584, %vm585
    %v587 = vsel %vm586, %v579, %v583
    %v588 = vand.u32 2147483647, %v578
    %vm589 = vcmp.eq.f32.partialorder %v588, 8.507059e+37
    %v590 = vand.u32 %v578, 2147483648
    %v591 = vor.u32 1.1754944e-38, %v590
    %v592 = vsel %vm589, %v591, %v587
    %v593 = vmul.f32 1.0, %v592
    %v594 = vtanh.pop %v574
    %v595 = vmul.f32 %v593, %v509
    %597 = vrot.lane.b32.xlu0 %v594, 64
    %v598 = vpop.permute.xlu0 %597
    %v600 = vmul.f32 %v593, %v598
    %602 = vrot.lane.b32.xlu0 %v600, 32
    %v603 = vpop.permute.xlu0 %602
    %v605 = vadd.f32 %v595, %v603
    %v606 = vtanh.pop %v605
    %608 = vrot.lane.b32.xlu0 %v606, 64
    %v609 = vpop.permute.xlu0 %608
    %v611 = vmul.f32 %v593, %v609
    %613 = vrot.lane.b32.xlu0 %v611, 32
    %v614 = vpop.permute.xlu0 %613
    %v615 = vsel %vm81, %v614, 0
    %617 = vmatpush.msra.mxu0 0.0
    %618 = vmatpush.msra.mxu0 0.0
    %619 = vmatpush.msra.mxu0 0.0
    %620 = vmatpush.msra.mxu0 0.0
    %621 = vmatpush.msra.mxu0 0.0
    %622 = vmatpush.msra.mxu0 0.0
    %623 = vmatpush.msra.mxu0 0.0
    %624 = vmatpush.msra.mxu0 0.0
    %625 = vmatpush.msra.mxu0 0.0
    %626 = vmatpush.msra.mxu0 0.0
    %627 = vmatpush.msra.mxu0 0.0
    %628 = vmatpush.msra.mxu0 0.0
    %629 = vmatpush.msra.mxu0 %v74
    %630 = vmatpush.msra.mxu0 %v73
    %631 = vmatpush.msra.mxu0 %v72
    %632 = vmatpush.msra.mxu0 %v71
    %633 = vmatmul.f32.gmra.mxu0 %v615
    %v634 = vpop.f32.mrf.mxu0
    %v635 = vadd.f32 %v225, %v634
    %636 = vdwg.mxu0
    %s637 = scalar_lea.vmem %s10, 8
    %638 = vst.msk [vmem:[%s637] sm:$0x3] %vm252, %v635
    %s639 = scalar_lea.vmem %s1, 10
    %v640 = vld [vmem:[%s639] sm:$0x3]
    %v641 = vld [vmem:[%s543] sm:$0x3]
    %v642 = vsub.f32 %v640, %v641
    %644 = vset.pattern.permute.xlu0 0
    %645 = vperm.xlu0 %644, %v642
    %v646 = vpop.permute.xlu0 %645
    %v648 = vmul.f32 %v646, %v263
    %v649 = vadd.f32 %v162, %v648
    %650 = vmatpush.msra.mxu0 0.0
    %651 = vmatpush.msra.mxu0 0.0
    %652 = vmatpush.msra.mxu0 0.0
    %653 = vmatpush.msra.mxu0 0.0
    %654 = vmatpush.msra.mxu0 0.0
    %655 = vmatpush.msra.mxu0 0.0
    %656 = vmatpush.msra.mxu0 0.0
    %657 = vmatpush.msra.mxu0 0.0
    %658 = vmatpush.msra.mxu0 0.0
    %659 = vmatpush.msra.mxu0 0.0
    %660 = vmatpush.msra.mxu0 0.0
    %661 = vmatpush.msra.mxu0 0.0
    %662 = vmatpush.msra.mxu0 %v70
    %663 = vmatpush.msra.mxu0 %v69
    %664 = vmatpush.msra.mxu0 %v68
    %665 = vmatpush.msra.mxu0 %v67
    %666 = vmatmul.f32.gmra.mxu0 %v615
    %v667 = vpop.f32.mrf.mxu0
    %v668 = vadd.f32 0.0, %v667
    %669 = vdwg.mxu0
    %v670 = vadd.f32 %v649, %v668
    %v671 = vxor.u32 %v670, 2147483648
    %v672 = vmul.f32 %v671, 1.442695
    %v673 = vpow.pop %v672
    %v674 = vadd.f32 %v673, 1.0
    %v675 = vrcp.pop %v674
    %v676 = vmul.f32 %v674, %v675
    %v677 = vsub.f32 1.0, %v676
    %v678 = vmul.f32 %v675, %v677
    %v679 = vadd.f32 %v675, %v678
    %vm680 = vweird.f32 %v674
    %vm681 = vweird.f32 %v675
    %vm682 = vmor %vm680, %vm681
    %v683 = vsel %vm682, %v675, %v679
    %v684 = vand.u32 2147483647, %v674
    %vm685 = vcmp.eq.f32.partialorder %v684, 8.507059e+37
    %v686 = vand.u32 %v674, 2147483648
    %v687 = vor.u32 1.1754944e-38, %v686
    %v688 = vsel %vm685, %v687, %v683
    %v689 = vmul.f32 1.0, %v688
    %v690 = vtanh.pop %v670
    %v691 = vmul.f32 %v689, %v605
    %693 = vrot.lane.b32.xlu0 %v690, 64
    %v694 = vpop.permute.xlu0 %693
    %v696 = vmul.f32 %v689, %v694
    %698 = vrot.lane.b32.xlu0 %v696, 32
    %v699 = vpop.permute.xlu0 %698
    %v701 = vadd.f32 %v691, %v699
    %v702 = vtanh.pop %v701
    %704 = vrot.lane.b32.xlu0 %v702, 64
    %v705 = vpop.permute.xlu0 %704
    %v707 = vmul.f32 %v689, %v705
    %709 = vrot.lane.b32.xlu0 %v707, 32
    %v710 = vpop.permute.xlu0 %709
    %v711 = vsel %vm81, %v710, 0
    %713 = vmatpush.msra.mxu0 0.0
    %714 = vmatpush.msra.mxu0 0.0
    %715 = vmatpush.msra.mxu0 0.0
    %716 = vmatpush.msra.mxu0 0.0
    %717 = vmatpush.msra.mxu0 0.0
    %718 = vmatpush.msra.mxu0 0.0
    %719 = vmatpush.msra.mxu0 0.0
    %720 = vmatpush.msra.mxu0 0.0
    %721 = vmatpush.msra.mxu0 0.0
    %722 = vmatpush.msra.mxu0 0.0
    %723 = vmatpush.msra.mxu0 0.0
    %724 = vmatpush.msra.mxu0 0.0
    %725 = vmatpush.msra.mxu0 %v74
    %726 = vmatpush.msra.mxu0 %v73
    %727 = vmatpush.msra.mxu0 %v72
    %728 = vmatpush.msra.mxu0 %v71
    %729 = vmatmul.f32.gmra.mxu0 %v711
    %v730 = vpop.f32.mrf.mxu0
    %v731 = vadd.f32 %v225, %v730
    %732 = vdwg.mxu0
    %s733 = scalar_lea.vmem %s10, 10
    %734 = vst.msk [vmem:[%s733] sm:$0x3] %vm252, %v731
    %s735 = scalar_lea.vmem %s1, 12
    %v736 = vld [vmem:[%s735] sm:$0x3]
    %v737 = vld [vmem:[%s639] sm:$0x3]
    %v738 = vsub.f32 %v736, %v737
    %740 = vset.pattern.permute.xlu0 0
    %741 = vperm.xlu0 %740, %v738
    %v742 = vpop.permute.xlu0 %741
    %v744 = vmul.f32 %v742, %v263
    %v745 = vadd.f32 %v162, %v744
    %746 = vmatpush.msra.mxu0 0.0
    %747 = vmatpush.msra.mxu0 0.0
    %748 = vmatpush.msra.mxu0 0.0
    %749 = vmatpush.msra.mxu0 0.0
    %750 = vmatpush.msra.mxu0 0.0
    %751 = vmatpush.msra.mxu0 0.0
    %752 = vmatpush.msra.mxu0 0.0
    %753 = vmatpush.msra.mxu0 0.0
    %754 = vmatpush.msra.mxu0 0.0
    %755 = vmatpush.msra.mxu0 0.0
    %756 = vmatpush.msra.mxu0 0.0
    %757 = vmatpush.msra.mxu0 0.0
    %758 = vmatpush.msra.mxu0 %v70
    %759 = vmatpush.msra.mxu0 %v69
    %760 = vmatpush.msra.mxu0 %v68
    %761 = vmatpush.msra.mxu0 %v67
    %762 = vmatmul.f32.gmra.mxu0 %v711
    %v763 = vpop.f32.mrf.mxu0
    %v764 = vadd.f32 0.0, %v763
    %765 = vdwg.mxu0
    %v766 = vadd.f32 %v745, %v764
    %v767 = vxor.u32 %v766, 2147483648
    %v768 = vmul.f32 %v767, 1.442695
    %v769 = vpow.pop %v768
    %v770 = vadd.f32 %v769, 1.0
    %v771 = vrcp.pop %v770
    %v772 = vmul.f32 %v770, %v771
    %v773 = vsub.f32 1.0, %v772
    %v774 = vmul.f32 %v771, %v773
    %v775 = vadd.f32 %v771, %v774
    %vm776 = vweird.f32 %v770
    %vm777 = vweird.f32 %v771
    %vm778 = vmor %vm776, %vm777
    %v779 = vsel %vm778, %v771, %v775
    %v780 = vand.u32 2147483647, %v770
    %vm781 = vcmp.eq.f32.partialorder %v780, 8.507059e+37
    %v782 = vand.u32 %v770, 2147483648
    %v783 = vor.u32 1.1754944e-38, %v782
    %v784 = vsel %vm781, %v783, %v779
    %v785 = vmul.f32 1.0, %v784
    %v786 = vtanh.pop %v766
    %v787 = vmul.f32 %v785, %v701
    %789 = vrot.lane.b32.xlu0 %v786, 64
    %v790 = vpop.permute.xlu0 %789
    %v792 = vmul.f32 %v785, %v790
    %794 = vrot.lane.b32.xlu0 %v792, 32
    %v795 = vpop.permute.xlu0 %794
    %v797 = vadd.f32 %v787, %v795
    %v798 = vtanh.pop %v797
    %800 = vrot.lane.b32.xlu0 %v798, 64
    %v801 = vpop.permute.xlu0 %800
    %v803 = vmul.f32 %v785, %v801
    %805 = vrot.lane.b32.xlu0 %v803, 32
    %v806 = vpop.permute.xlu0 %805
    %v807 = vsel %vm81, %v806, 0
    %809 = vmatpush.msra.mxu0 0.0
    %810 = vmatpush.msra.mxu0 0.0
    %811 = vmatpush.msra.mxu0 0.0
    %812 = vmatpush.msra.mxu0 0.0
    %813 = vmatpush.msra.mxu0 0.0
    %814 = vmatpush.msra.mxu0 0.0
    %815 = vmatpush.msra.mxu0 0.0
    %816 = vmatpush.msra.mxu0 0.0
    %817 = vmatpush.msra.mxu0 0.0
    %818 = vmatpush.msra.mxu0 0.0
    %819 = vmatpush.msra.mxu0 0.0
    %820 = vmatpush.msra.mxu0 0.0
    %821 = vmatpush.msra.mxu0 %v74
    %822 = vmatpush.msra.mxu0 %v73
    %823 = vmatpush.msra.mxu0 %v72
    %824 = vmatpush.msra.mxu0 %v71
    %825 = vmatmul.f32.gmra.mxu0 %v807
    %v826 = vpop.f32.mrf.mxu0
    %v827 = vadd.f32 %v225, %v826
    %828 = vdwg.mxu0
    %s829 = scalar_lea.vmem %s10, 12
    %830 = vst.msk [vmem:[%s829] sm:$0x3] %vm252, %v827
    %s831 = scalar_lea.vmem %s1, 14
    %v832 = vld [vmem:[%s831] sm:$0x3]
    %v833 = vld [vmem:[%s735] sm:$0x3]
    %v834 = vsub.f32 %v832, %v833
    %836 = vset.pattern.permute.xlu0 0
    %837 = vperm.xlu0 %836, %v834
    %v838 = vpop.permute.xlu0 %837
    %v840 = vmul.f32 %v838, %v263
    %v841 = vadd.f32 %v162, %v840
    %842 = vmatpush.msra.mxu0 0.0
    %843 = vmatpush.msra.mxu0 0.0
    %844 = vmatpush.msra.mxu0 0.0
    %845 = vmatpush.msra.mxu0 0.0
    %846 = vmatpush.msra.mxu0 0.0
    %847 = vmatpush.msra.mxu0 0.0
    %848 = vmatpush.msra.mxu0 0.0
    %849 = vmatpush.msra.mxu0 0.0
    %850 = vmatpush.msra.mxu0 0.0
    %851 = vmatpush.msra.mxu0 0.0
    %852 = vmatpush.msra.mxu0 0.0
    %853 = vmatpush.msra.mxu0 0.0
    %854 = vmatpush.msra.mxu0 %v70
    %855 = vmatpush.msra.mxu0 %v69
    %856 = vmatpush.msra.mxu0 %v68
    %857 = vmatpush.msra.mxu0 %v67
    %858 = vmatmul.f32.gmra.mxu0 %v807
    %v859 = vpop.f32.mrf.mxu0
    %v860 = vadd.f32 0.0, %v859
    %861 = vdwg.mxu0
    %v862 = vadd.f32 %v841, %v860
    %v863 = vxor.u32 %v862, 2147483648
    %v864 = vmul.f32 %v863, 1.442695
    %v865 = vpow.pop %v864
    %v866 = vadd.f32 %v865, 1.0
    %v867 = vrcp.pop %v866
    %v868 = vmul.f32 %v866, %v867
    %v869 = vsub.f32 1.0, %v868
    %v870 = vmul.f32 %v867, %v869
    %v871 = vadd.f32 %v867, %v870
    %vm872 = vweird.f32 %v866
    %vm873 = vweird.f32 %v867
    %vm874 = vmor %vm872, %vm873
    %v875 = vsel %vm874, %v867, %v871
    %v876 = vand.u32 2147483647, %v866
    %vm877 = vcmp.eq.f32.partialorder %v876, 8.507059e+37
    %v878 = vand.u32 %v866, 2147483648
    %v879 = vor.u32 1.1754944e-38, %v878
    %v880 = vsel %vm877, %v879, %v875
    %v881 = vmul.f32 1.0, %v880
    %v882 = vtanh.pop %v862
    %v883 = vmul.f32 %v881, %v797
    %885 = vrot.lane.b32.xlu0 %v882, 64
    %v886 = vpop.permute.xlu0 %885
    %v888 = vmul.f32 %v881, %v886
    %890 = vrot.lane.b32.xlu0 %v888, 32
    %v891 = vpop.permute.xlu0 %890
    %v893 = vadd.f32 %v883, %v891
    %v894 = vtanh.pop %v893
    %896 = vrot.lane.b32.xlu0 %v894, 64
    %v897 = vpop.permute.xlu0 %896
    %v899 = vmul.f32 %v881, %v897
    %901 = vrot.lane.b32.xlu0 %v899, 32
    %v902 = vpop.permute.xlu0 %901
    %v903 = vsel %vm81, %v902, 0
    %905 = vmatpush.msra.mxu0 0.0
    %906 = vmatpush.msra.mxu0 0.0
    %907 = vmatpush.msra.mxu0 0.0
    %908 = vmatpush.msra.mxu0 0.0
    %909 = vmatpush.msra.mxu0 0.0
    %910 = vmatpush.msra.mxu0 0.0
    %911 = vmatpush.msra.mxu0 0.0
    %912 = vmatpush.msra.mxu0 0.0
    %913 = vmatpush.msra.mxu0 0.0
    %914 = vmatpush.msra.mxu0 0.0
    %915 = vmatpush.msra.mxu0 0.0
    %916 = vmatpush.msra.mxu0 0.0
    %917 = vmatpush.msra.mxu0 %v74
    %918 = vmatpush.msra.mxu0 %v73
    %919 = vmatpush.msra.mxu0 %v72
    %920 = vmatpush.msra.mxu0 %v71
    %921 = vmatmul.f32.gmra.mxu0 %v903
    %v922 = vpop.f32.mrf.mxu0
    %v923 = vadd.f32 %v225, %v922
    %924 = vdwg.mxu0
    %s925 = scalar_lea.vmem %s10, 14
    %926 = vst.msk [vmem:[%s925] sm:$0x3] %vm252, %v923
    // Predicated region
    $region50: #{tpu_custom_call.1} parent=1 // pred_check
      _
    $region51: #{tpu_custom_call.1} parent=1 // pred_check_branch
      %928 = sbr.rel (0) target = $region53
    $region52: #{tpu_custom_call.1} parent=1 // pred_region
      _
    $region53: #{tpu_custom_call.1} parent=1 // pred_fallthru
      _
    // Predicated region
    $region54: #{tpu_custom_call.1} parent=1 // pred_check
      _
    $region55: #{tpu_custom_call.1} parent=1 // pred_check_branch
      %930 = sbr.rel (0) target = $region57
    $region56: #{tpu_custom_call.1} parent=1 // pred_region
      _
    $region57: #{tpu_custom_call.1} parent=1 // pred_fallthru
      _
    %931 = vsyncpa [#allocation3], 1
    %932 = vsyncpa [#allocation5], 1

</llo_original>
